<compile_context>
chip_gen: v5e
topology: v5e:2x2
jax: 0.10.0
libtpu: 0.0.40
codegen_flags: <defaults>
</compile_context>

<pallas_src>
import math

import jax
import jax.numpy as jnp
from jax.experimental import pallas as pl
from jax.experimental.pallas import tpu as pltpu


def _pick_tile_rows(batch, max_tile=512):
    """Row-tile that (a) divides `batch` exactly (no pad / output slice) and
    (b) yields >=2 parallel grid tiles when possible (v7x has 2 TCs)."""
    if batch > max_tile:
        for t in range(max_tile, 7, -8):         # largest 8-aligned divisor
            if batch % t == 0:
                return t
        return batch                              # rare fallback: one full-extent tile
    if batch >= 16 and batch % 16 == 0:
        return batch // 2                         # 2 parallel 8-aligned tiles
    return batch                                  # full extent (exempt from 8x128 rule)


def _vmem_limit(n_bytes):
    return max(32 * 1024 * 1024, int(n_bytes))


def prepare_params(w_x, w_h, b_h, dtype=None):
    """Hoisted ONCE (never per step, never per timestep inside a scan).

    w_x : [Out, In]   linear_W.weight   (PyTorch layout)
    w_h : [Out, Out]  linear_W_h.weight (PyTorch layout)
    b_h : [Out]       linear_W_h.bias
    Returns w_cat [In+Out, Out] (optionally cast, e.g. to bf16) and
    b [1, Out] kept in f32 for the epilogue.
    """
    w_cat = jnp.concatenate([w_x.T, w_h.T], axis=0)
    if dtype is not None:
        w_cat = w_cat.astype(dtype)
    return w_cat, b_h.reshape(1, -1).astype(jnp.float32)


# ----------------------------- kernels --------------------------------------


def _rnn_step_kernel(x_ref, h_ref, w_ref, b_ref, o_ref):
    # Single fused contraction of depth In+Out; f32 accumulate; f32 epilogue.
    xh = jnp.concatenate([x_ref[...], h_ref[...]], axis=-1)          # (tile, In+Out)
    pre = jnp.dot(xh, w_ref[...], preferred_element_type=jnp.float32)
    pre = pre + b_ref[...].astype(jnp.float32)
    o_ref[...] = jnp.tanh(pre).astype(o_ref.dtype)                   # tanh -> EUP


def _rnn_seq_kernel(x_ref, h0_ref, w_ref, b_ref, o_ref, h_acc):
    # h_acc (VMEM, f32) carries the hidden state across the sequential time axis.
    @pl.when(pl.program_id(1) == 0)
    def _():
        h_acc[...] = h0_ref[...].astype(jnp.float32)

    cdt = x_ref.dtype
    xh = jnp.concatenate([x_ref[0], h_acc[...].astype(cdt)], axis=-1)
    pre = jnp.dot(xh, w_ref[...], preferred_element_type=jnp.float32)
    pre = pre + b_ref[...].astype(jnp.float32)
    h_new = jnp.tanh(pre)
    h_acc[...] = h_new
    o_ref[...] = h_new[None].astype(o_ref.dtype)


# ----------------------------- wrappers -------------------------------------


def rnn_hidden_step(x, h_prev, w_cat, b, *, max_tile_rows=512):
    """One RNN_Hidden.forward step: tanh([x, h_prev] @ w_cat + b)."""
    B, In = x.shape
    K, Out = w_cat.shape
    assert h_prev.shape == (B, Out) and K == In + Out
    h_prev = h_prev.astype(x.dtype)

    tile = _pick_tile_rows(B, max_tile_rows)
    isz = jnp.dtype(x.dtype).itemsize
    wsz = jnp.dtype(w_cat.dtype).itemsize
    cost = pl.CostEstimate(
        flops=2 * B * Out * K,
        transcendentals=B * Out,
        bytes_accessed=B * (In + 2 * Out) * isz + K * Out * wsz + Out * 4)
    vmem_need = 2 * tile * (In + 2 * Out) * isz + 2 * K * Out * wsz + 2 * Out * 4

    return pl.pallas_call(
        _rnn_step_kernel,
        out_shape=jax.ShapeDtypeStruct((B, Out), x.dtype),
        grid_spec=pltpu.PrefetchScalarGridSpec(
            num_scalar_prefetch=0,
            grid=(B // tile,),
            in_specs=[
                pl.BlockSpec((tile, In), lambda i: (i, 0)),    # x tile
                pl.BlockSpec((tile, Out), lambda i: (i, 0)),   # h tile
                pl.BlockSpec((K, Out), lambda i: (0, 0)),      # W_cat (resident)
                pl.BlockSpec((1, Out), lambda i: (0, 0)),      # bias  (resident)
            ],
            out_specs=pl.BlockSpec((tile, Out), lambda i: (i, 0)),
        ),
        compiler_params=pltpu.CompilerParams(
            dimension_semantics=("parallel",),
            vmem_limit_bytes=_vmem_limit(2 * vmem_need)),
        cost_estimate=cost,
    )(x, h_prev, w_cat, b)


def rnn_hidden_sequence(xs, h0, w_cat, b, *, max_tile_rows=512):
    """Fused T-step recurrence: h_t = tanh([x_t, h_{t-1}] @ w_cat + b).

    xs: [T, B, In], h0: [B, Out] -> all hidden states [T, B, Out].
    h lives in VMEM across timesteps; weights stay resident; one pallas_call.
    """
    T, B, In = xs.shape
    K, Out = w_cat.shape
    assert h0.shape == (B, Out) and K == In + Out
    h0 = h0.astype(xs.dtype)

    tile = _pick_tile_rows(B, max_tile_rows)
    isz = jnp.dtype(xs.dtype).itemsize
    wsz = jnp.dtype(w_cat.dtype).itemsize
    cost = pl.CostEstimate(
        flops=2 * T * B * Out * K,
        transcendentals=T * B * Out,
        bytes_accessed=T * B * (In + Out) * isz + B * Out * isz + K * Out * wsz + Out * 4)
    vmem_need = 2 * tile * (In + 2 * Out) * isz + 2 * K * Out * wsz + tile * Out * 4

    return pl.pallas_call(
        _rnn_seq_kernel,
        out_shape=jax.ShapeDtypeStruct((T, B, Out), xs.dtype),
        grid_spec=pltpu.PrefetchScalarGridSpec(
            num_scalar_prefetch=0,
            grid=(B // tile, T),                              # time last = sequential carry
            in_specs=[
                pl.BlockSpec((1, tile, In), lambda i, t: (t, i, 0)),   # x_t tile
                pl.BlockSpec((tile, Out), lambda i, t: (i, 0)),        # h0 tile
                pl.BlockSpec((K, Out), lambda i, t: (0, 0)),           # W_cat (resident)
                pl.BlockSpec((1, Out), lambda i, t: (0, 0)),           # bias  (resident)
            ],
            out_specs=pl.BlockSpec((1, tile, Out), lambda i, t: (t, i, 0)),
            scratch_shapes=[pltpu.VMEM((tile, Out), jnp.float32)],     # carried h
        ),
        compiler_params=pltpu.CompilerParams(
            dimension_semantics=("parallel", "arbitrary"),
            vmem_limit_bytes=_vmem_limit(2 * vmem_need)),
        cost_estimate=cost,
    )(xs, h0, w_cat, b)


# ----------------------------- reference & test -----------------------------


def _reference_step(x, h, w_x, w_h, b_h):
    return jnp.tanh(x @ w_x.T + h @ w_h.T + b_h)


def _reference_sequence(xs, h0, w_x, w_h, b_h):
    def step(h, x):
        h_new = jnp.tanh(x @ w_x.T + h @ w_h.T + b_h)
        return h_new, h_new
    _, hs = jax.lax.scan(step, h0, xs)
    return hs


if __name__ == "__main__":
    key = jax.random.PRNGKey(0)
    B, In, Out, T = 16, 128, 128, 8
    k_x, k_h, k_wx, k_wh, k_b, k_seq = jax.random.split(key, 6)

    x = jax.random.normal(k_x, (B, In), jnp.float32)
    h0 = jax.random.normal(k_h, (B, Out), jnp.float32)
    xs = jax.random.normal(k_seq, (T, B, In), jnp.float32)

    # init_weights_uniform: U(-k, k), k = sqrt(1 / output)
    k_init = math.sqrt(1.0 / Out)
    w_x = jax.random.uniform(k_wx, (Out, In), jnp.float32, -k_init, k_init)
    w_h = jax.random.uniform(k_wh, (Out, Out), jnp.float32, -k_init, k_init)
    b_h = jax.random.uniform(k_b, (Out,), jnp.float32, -k_init, k_init)

    # ---- f32: single step (exactly RNN_Hidden.forward) ----
    w_cat, b2 = prepare_params(w_x, w_h, b_h)
    h_t = jax.block_until_ready(rnn_hidden_step(x, h0, w_cat, b2))
    ref = _reference_step(x, h0, w_x, w_h, b_h)
    assert h_t.shape == (B, Out)
    assert jnp.allclose(h_t, ref, atol=1e-3, rtol=1e-3), \
        float(jnp.max(jnp.abs(h_t - ref)))

    # ---- f32: fused T-step recurrence (h carried in VMEM scratch) ----
    hs = jax.block_until_ready(rnn_hidden_sequence(xs, h0, w_cat, b2))
    ref_hs = _reference_sequence(xs, h0, w_x, w_h, b_h)
    assert hs.shape == (T, B, Out)
    assert jnp.allclose(hs, ref_hs, atol=1e-3, rtol=1e-3), \
        float(jnp.max(jnp.abs(hs - ref_hs)))

    # ---- bf16 activations/weights (f32 accumulation + f32 epilogue) ----
    w_cat_b, b2_b = prepare_params(w_x, w_h, b_h, dtype=jnp.bfloat16)
    xs_b = xs.astype(jnp.bfloat16)
    h0_b = h0.astype(jnp.bfloat16)
    hs_b = jax.block_until_ready(rnn_hidden_sequence(xs_b, h0_b, w_cat_b, b2_b))
    ref_hs_b = _reference_sequence(
        xs_b.astype(jnp.float32), h0_b.astype(jnp.float32),
        w_x.astype(jnp.bfloat16).astype(jnp.float32),
        w_h.astype(jnp.bfloat16).astype(jnp.float32), b_h)
    err = float(jnp.max(jnp.abs(hs_b.astype(jnp.float32) - ref_hs_b)))
    assert err < 5e-2, err

    print("KERNEL_OK")
</pallas_src>

<mosaic_0001>
module attributes {stable_mosaic.version = 11 : i64} {
  func.func @_rnn_step_kernel(%arg0: i32, %arg1: memref<8x128xf32, #tpu.memory_space<vmem>>, %arg2: memref<8x128xf32, #tpu.memory_space<vmem>>, %arg3: memref<256x128xf32, #tpu.memory_space<vmem>>, %arg4: memref<1x128xf32, #tpu.memory_space<vmem>>, %arg5: memref<8x128xf32, #tpu.memory_space<vmem>>) attributes {dimension_semantics = [#tpu.dimension_semantics<parallel>], iteration_bounds = array<i64: 2>, scalar_prefetch = 0 : i64, scratch_operands = 0 : i64, tpu.core_type = #tpu.core_type<tc>, window_params = [{transform_indices = @transform_0, window_bounds = array<i64: 8, 128>}, {transform_indices = @transform_1, window_bounds = array<i64: 8, 128>}, {pipeline_mode = #tpu.pipeline_mode<synchronous>, transform_indices = @transform_2, window_bounds = array<i64: 256, 128>}, {pipeline_mode = #tpu.pipeline_mode<synchronous>, transform_indices = @transform_3, window_bounds = array<i64: 1, 128>}, {transform_indices = @transform_4, window_bounds = array<i64: 8, 128>}]} {
    %c0 = arith.constant 0 : index
    %c0_0 = arith.constant 0 : index
    %0 = vector.load %arg1[%c0, %c0_0] : memref<8x128xf32, #tpu.memory_space<vmem>>, vector<8x128xf32>
    %c0_1 = arith.constant 0 : index
    %c0_2 = arith.constant 0 : index
    %1 = vector.load %arg2[%c0_1, %c0_2] : memref<8x128xf32, #tpu.memory_space<vmem>>, vector<8x128xf32>
    %2 = tpu.concatenate %0, %1 in 1 : vector<8x128xf32>, vector<8x128xf32> -> vector<8x256xf32>
    %c0_3 = arith.constant 0 : index
    %c0_4 = arith.constant 0 : index
    %3 = vector.load %arg3[%c0_3, %c0_4] : memref<256x128xf32, #tpu.memory_space<vmem>>, vector<256x128xf32>
    %cst = arith.constant dense<0.000000e+00> : vector<8x128xf32>
    %4 = tpu.matmul %2, %3, %cst {dimension_numbers = #tpu.dot_dimension_numbers<[1], [0], [0], [1], [0, 0, 1, 1], [], []>} : vector<8x256xf32>, vector<256x128xf32>, vector<8x128xf32> -> vector<8x128xf32>
    %c0_5 = arith.constant 0 : index
    %c0_6 = arith.constant 0 : index
    %5 = vector.load %arg4[%c0_5, %c0_6] : memref<1x128xf32, #tpu.memory_space<vmem>>, vector<1x128xf32>
    %6 = vector.broadcast %5 : vector<1x128xf32> to vector<8x128xf32>
    %7 = arith.addf %4, %6 : vector<8x128xf32>
    %8 = math.tanh %7 : vector<8x128xf32>
    %c0_7 = arith.constant 0 : index
    %c0_8 = arith.constant 0 : index
    %9 = vector.load %arg5[%c0_7, %c0_8] : memref<8x128xf32, #tpu.memory_space<vmem>>, vector<8x128xf32>
    tpu.vector_store %arg5[%c0_7, %c0_8], %8 {strides = array<i32>} : memref<8x128xf32, #tpu.memory_space<vmem>>, vector<8x128xf32>,
    return
  }
  func.func @transform_0(%arg0: i32) -> (i32, i32) {
    %c0_i32 = arith.constant 0 : i32
    %c0_i32_0 = arith.constant 0 : i32
    return %arg0, %c0_i32 : i32, i32
  }
  func.func @transform_1(%arg0: i32) -> (i32, i32) {
    %c0_i32 = arith.constant 0 : i32
    %c0_i32_0 = arith.constant 0 : i32
    return %arg0, %c0_i32 : i32, i32
  }
  func.func @transform_2(%arg0: i32) -> (i32, i32) {
    %c0_i32 = arith.constant 0 : i32
    %c0_i32_0 = arith.constant 0 : i32
    %c0_i32_1 = arith.constant 0 : i32
    return %c0_i32, %c0_i32_0 : i32, i32
  }
  func.func @transform_3(%arg0: i32) -> (i32, i32) {
    %c0_i32 = arith.constant 0 : i32
    %c0_i32_0 = arith.constant 0 : i32
    %c0_i32_1 = arith.constant 0 : i32
    return %c0_i32, %c0_i32_0 : i32, i32
  }
  func.func @transform_4(%arg0: i32) -> (i32, i32) {
    %c0_i32 = arith.constant 0 : i32
    %c0_i32_0 = arith.constant 0 : i32
    return %arg0, %c0_i32 : i32, i32
  }
}

</mosaic_0001>

<llo_original>
// kernel: tpu_custom_call.1
$region0: #{tpu_custom_call.1}
  #allocation0 [shape = 'u32[]', space=smem, size = 0x4, offset = 0x4, fixed_abs, tag = 'smem constant byte address 0x4 - core index']
  #allocation1 [shape = 'u32[72,128]{1,0:T(1,128)}', space=vmem, size = 0x9000, scoped, tag = 'internal scratch']
  %s0 = inlined_call_operand.hbm [shape: f32[16,128], index: 0, kind: input, shape index: {}]
  %s1 = inlined_call_operand.hbm [shape: f32[16,128], index: 1, kind: input, shape index: {}]
  %s2 = inlined_call_operand.hbm [shape: f32[256,128], index: 2, kind: input, shape index: {}]
  %s3 = inlined_call_operand.vmem [shape: f32[1,128], index: 3, kind: input, shape index: {}]
  %s4 = inlined_call_operand.hbm [shape: f32[16,128], index: 4, kind: output, shape index: {}]
  %s5 = sld [smem:[#allocation0]]
  $region61: #{tpu_custom_call.1} parent=0
    _
  %s7 = ssub.s32 1, %s5
  %s8 = scalar_select 0, %s7, %s5
  $region1: #{tpu_custom_call.1} parent=0
    #allocation2 [shape = 'u8[8192]{0}', space=vmem, size = 0x2000, scoped, tag = 'input window, operand 0']
    #allocation3 [shape = 's32[2]{0}', space=sflag, size = 0x8, scoped, tag = 'scoped memory for tpu_custom_call.1']
    #allocation4 [shape = 's32[2]{0}', space=sflag, size = 0x8, scoped, tag = 'scoped memory for tpu_custom_call.1']
    #allocation5 [shape = 'u8[8192]{0}', space=vmem, size = 0x2000, scoped, tag = 'input window, operand 1']
    #allocation6 [shape = 's32[2]{0}', space=sflag, size = 0x8, scoped, tag = 'scoped memory for tpu_custom_call.1']
    #allocation7 [shape = 'u8[131072]{0}', space=vmem, size = 0x20000, scoped, tag = 'input window, operand 2, single buffered']
    #allocation8 [shape = 'u8[8192]{0}', space=vmem, size = 0x2000, scoped, tag = 'output window, operand 0']
    %9 = vsyncpa [#allocation3], 0
    %s10 = scalar_lea.sflag [#allocation3], 1
    %11 = vsyncpa %s10, 0
    %12 = vsyncpa [#allocation6], 0
    %s13 = scalar_lea.sflag [#allocation6], 1
    %14 = vsyncpa %s13, 0
    %15 = vsyncpa [#allocation4], 0
    %s16 = scalar_lea.sflag [#allocation4], 1
    %17 = vsyncpa %s16, 0
    loop: start=0, step=1, limit=4
    $region2: #{tpu_custom_call.1} parent=1 // loop_pre_header
      _
    $region3: #{tpu_custom_call.1} parent=1 // loop_header
      %s19 = sphi 0, %s23
      %p20 = scmp.ge.s32.totalorder %s19, 4
      %s29 = sphi 0, %s31
      %s32 = sphi 0, %s29
      %s33 = sphi 0, %s32
      %s49 = sphi 0, %s33
      %s55 = sphi 0, %s57
      %s58 = sphi 0, %s55
      %s59 = sphi 0, %s58
      %s75 = sphi 0, %s59
      %s79 = sphi 0, %s79
      %s81 = sphi 0, %s79
      %s82 = sphi 0, %s81
      %s96 = sphi 0, %s82
      %s100 = sphi 0, %s100
      %s102 = sphi 0, %s100
      %s103 = sphi 0, %s102
      %s117 = sphi 0, %s103
      %s123 = sphi 0, %s125
      %s126 = sphi 0, %s123
      %s127 = sphi 0, %s126
      %s143 = sphi 0, %s127
    $region4: #{tpu_custom_call.1} parent=1 // loop_header_branch
      %22 = sbr.rel (%p20) target = $region8
    $region5: #{tpu_custom_call.1} parent=1 // loop_body
      %s24 = ssub.s32 %s19, 1
      %s25 = ssub.s32 %s19, 2
      %s26 = sadd.s32 %s19, 1
      %s27 = ssub.s32 %s19, %s26
      %p28 = scmp.eq.s32.totalorder %s27, 0
      %s30 = sadd.s32 %s29, 1
      %s31 = scalar_select %p28, %s29, %s30
      %p34 = pneg %p28
      %p35 = scmp.eq.s32.totalorder %s19, 1
      %p36 = por %p34, %p35
      %p37 = scmp.ne.s32.totalorder %s29, %s32
      %p38 = scmp.eq.s32.totalorder %s19, 0
      %p39 = por %p37, %p38
      %p40 = scmp.ne.s32.totalorder %s29, %s32
      %p41 = scmp.eq.s32.totalorder %s24, 1
      %p42 = por %p40, %p41
      %p43 = scmp.ne.s32.totalorder %s32, %s33
      %p44 = scmp.eq.s32.totalorder %s24, 0
      %p45 = por %p43, %p44
      %p46 = scmp.ne.s32.totalorder %s32, %s33
      %p47 = scmp.eq.s32.totalorder %s25, 1
      %p48 = por %p46, %p47
      %p50 = scmp.ne.s32.totalorder %s33, %s49
      %p51 = scmp.eq.s32.totalorder %s25, 0
      %p52 = por %p50, %p51
      %s53 = ssub.s32 %s19, %s26
      %p54 = scmp.eq.s32.totalorder %s53, 0
      %s56 = sadd.s32 %s55, 1
      %s57 = scalar_select %p54, %s55, %s56
      %p60 = pneg %p54
      %p61 = scmp.eq.s32.totalorder %s19, 1
      %p62 = por %p60, %p61
      %p63 = scmp.ne.s32.totalorder %s55, %s58
      %p64 = scmp.eq.s32.totalorder %s19, 0
      %p65 = por %p63, %p64
      %p66 = scmp.ne.s32.totalorder %s55, %s58
      %p67 = scmp.eq.s32.totalorder %s24, 1
      %p68 = por %p66, %p67
      %p69 = scmp.ne.s32.totalorder %s58, %s59
      %p70 = scmp.eq.s32.totalorder %s24, 0
      %p71 = por %p69, %p70
      %p72 = scmp.ne.s32.totalorder %s58, %s59
      %p73 = scmp.eq.s32.totalorder %s25, 1
      %p74 = por %p72, %p73
      %p76 = scmp.ne.s32.totalorder %s59, %s75
      %p77 = scmp.eq.s32.totalorder %s25, 0
      %p78 = por %p76, %p77
      %s80 = sadd.s32 %s79, 1
      %p83 = scmp.eq.s32.totalorder %s19, 1
      %p84 = scmp.ne.s32.totalorder %s79, %s81
      %p85 = scmp.eq.s32.totalorder %s19, 0
      %p86 = por %p84, %p85
      %p87 = scmp.ne.s32.totalorder %s79, %s81
      %p88 = scmp.eq.s32.totalorder %s24, 1
      %p89 = por %p87, %p88
      %p90 = scmp.ne.s32.totalorder %s81, %s82
      %p91 = scmp.eq.s32.totalorder %s24, 0
      %p92 = por %p90, %p91
      %p93 = scmp.ne.s32.totalorder %s81, %s82
      %p94 = scmp.eq.s32.totalorder %s25, 1
      %p95 = por %p93, %p94
      %p97 = scmp.ne.s32.totalorder %s82, %s96
      %p98 = scmp.eq.s32.totalorder %s25, 0
      %p99 = por %p97, %p98
      %s101 = sadd.s32 %s100, 1
      %p104 = scmp.eq.s32.totalorder %s19, 1
      %p105 = scmp.ne.s32.totalorder %s100, %s102
      %p106 = scmp.eq.s32.totalorder %s19, 0
      %p107 = por %p105, %p106
      %p108 = scmp.ne.s32.totalorder %s100, %s102
      %p109 = scmp.eq.s32.totalorder %s24, 1
      %p110 = por %p108, %p109
      %p111 = scmp.ne.s32.totalorder %s102, %s103
      %p112 = scmp.eq.s32.totalorder %s24, 0
      %p113 = por %p111, %p112
      %p114 = scmp.ne.s32.totalorder %s102, %s103
      %p115 = scmp.eq.s32.totalorder %s25, 1
      %p116 = por %p114, %p115
      %p118 = scmp.ne.s32.totalorder %s103, %s117
      %p119 = scmp.eq.s32.totalorder %s25, 0
      %p120 = por %p118, %p119
      %s121 = ssub.s32 %s19, %s26
      %p122 = scmp.eq.s32.totalorder %s121, 0
      %s124 = sadd.s32 %s123, 1
      %s125 = scalar_select %p122, %s123, %s124
      %p128 = pneg %p122
      %p129 = scmp.eq.s32.totalorder %s19, 1
      %p130 = por %p128, %p129
      %p131 = scmp.ne.s32.totalorder %s123, %s126
      %p132 = scmp.eq.s32.totalorder %s19, 0
      %p133 = por %p131, %p132
      %p134 = scmp.ne.s32.totalorder %s123, %s126
      %p135 = scmp.eq.s32.totalorder %s24, 1
      %p136 = por %p134, %p135
      %p137 = scmp.ne.s32.totalorder %s126, %s127
      %p138 = scmp.eq.s32.totalorder %s24, 0
      %p139 = por %p137, %p138
      %p140 = scmp.ne.s32.totalorder %s126, %s127
      %p141 = scmp.eq.s32.totalorder %s25, 1
      %p142 = por %p140, %p141
      %p144 = scmp.ne.s32.totalorder %s127, %s143
      %p145 = scmp.eq.s32.totalorder %s25, 0
      %p146 = por %p144, %p145
      %p147 = scmp.le.s32.totalorder 1, %s19
      %p148 = scmp.lt.s32.totalorder %s19, 3
      %p149 = pnand %p147, %p148
      %p150 = pneg %p149
      // Predicated region
      $region9: #{tpu_custom_call.1} parent=5 // pred_check
        _
      $region10: #{tpu_custom_call.1} parent=5 // pred_check_branch
        %152 = sbr.rel (%p149) target = $region12
      $region11: #{tpu_custom_call.1} parent=5 // pred_region
        %s153 = ssub.s32 %s19, 1
        // Predicated region
        $region13: #{tpu_custom_call.1} parent=11 // pred_check
          %p154 = pneg %p92
        $region14: #{tpu_custom_call.1} parent=11 // pred_check_branch
          %156 = sbr.rel (%p154) target = $region16
        $region15: #{tpu_custom_call.1} parent=11 // pred_region
          %158 = vsyncadd [#allocation6], 0
          %s159 = sshll.u32 %s2, 4
          %s160 = int_to_ptr.hbm [resolvable:$true] %s159
          %s161 = sshll.u32 [#allocation7], 4
          %s162 = int_to_ptr.vmem [resolvable:$true] %s161
          %167 = dma.hbm_to_vmem [thread:$0]  %s160, 4096, %s162, [#allocation6], 128, 128, 8
        $region16: #{tpu_custom_call.1} parent=11 // pred_fallthru
          _
        // Predicated region
        $region17: #{tpu_custom_call.1} parent=11 // pred_check
          %p168 = pneg %p113
        $region18: #{tpu_custom_call.1} parent=11 // pred_check_branch
          %170 = sbr.rel (%p168) target = $region20
        $region19: #{tpu_custom_call.1} parent=11 // pred_region
          _
        $region20: #{tpu_custom_call.1} parent=11 // pred_fallthru
          _
      $region12: #{tpu_custom_call.1} parent=5 // pred_fallthru
        _
      %p171 = scmp.lt.s32.totalorder %s19, 2
      // Predicated region
      $region21: #{tpu_custom_call.1} parent=5 // pred_check
        %p172 = pneg %p171
      $region22: #{tpu_custom_call.1} parent=5 // pred_check_branch
        %174 = sbr.rel (%p172) target = $region24
      $region23: #{tpu_custom_call.1} parent=5 // pred_region
        // Predicated region
        $region25: #{tpu_custom_call.1} parent=23 // pred_check
          %p175 = pneg %p39
        $region26: #{tpu_custom_call.1} parent=23 // pred_check_branch
          %177 = sbr.rel (%p175) target = $region28
        $region27: #{tpu_custom_call.1} parent=23 // pred_region
          %s178 = sand.u32 %s29, 1
          %s179 = scalar_lea.sflag [#allocation3], %s178
          %s180 = sand.u32 %s29, 1
          %s181 = smul.addr %s180, 8
          %s182 = scalar_lea.vmem [#allocation2], %s181
          %184 = vsyncadd %s179, 0
          %s185 = smul.addr %s19, 8
          %s186 = scalar_lea.hbm %s0, %s185
          %s188 = sshll.u32 %s186, 4
          %s189 = int_to_ptr.hbm [resolvable:$true] %s188
          %s190 = sshll.u32 %s182, 4
          %s191 = int_to_ptr.vmem [resolvable:$true] %s190
          %193 = dma.hbm_to_vmem [thread:$0]  %s189, 128, %s191, %s179
        $region28: #{tpu_custom_call.1} parent=23 // pred_fallthru
          _
        // Predicated region
        $region29: #{tpu_custom_call.1} parent=23 // pred_check
          %p194 = pneg %p65
        $region30: #{tpu_custom_call.1} parent=23 // pred_check_branch
          %196 = sbr.rel (%p194) target = $region32
        $region31: #{tpu_custom_call.1} parent=23 // pred_region
          %s197 = sand.u32 %s19, 1
          %s198 = scalar_lea.sflag [#allocation6], %s197
          %s199 = sand.u32 %s55, 1
          %s200 = smul.addr %s199, 8
          %s201 = scalar_lea.vmem [#allocation5], %s200
          %203 = vsyncadd %s198, 0
          %s204 = smul.addr %s19, 8
          %s205 = scalar_lea.hbm %s1, %s204
          %s207 = sshll.u32 %s205, 4
          %s208 = int_to_ptr.hbm [resolvable:$true] %s207
          %s209 = sshll.u32 %s201, 4
          %s210 = int_to_ptr.vmem [resolvable:$true] %s209
          %212 = dma.hbm_to_vmem [thread:$0]  %s208, 128, %s210, %s198
        $region32: #{tpu_custom_call.1} parent=23 // pred_fallthru
          _
      $region24: #{tpu_custom_call.1} parent=5 // pred_fallthru
        _
      %p213 = scmp.le.s32.totalorder 1, %s19
      %p214 = scmp.lt.s32.totalorder %s19, 3
      %p215 = pnand %p213, %p214
      %p216 = pneg %p215
      // Predicated region
      $region33: #{tpu_custom_call.1} parent=5 // pred_check
        _
      $region34: #{tpu_custom_call.1} parent=5 // pred_check_branch
        %218 = sbr.rel (%p215) target = $region36
      $region35: #{tpu_custom_call.1} parent=5 // pred_region
        %s219 = ssub.s32 %s19, 1
        %s220 = sand.u32 %s32, 1
        %s221 = scalar_lea.sflag [#allocation3], %s220
        %s222 = sand.u32 %s32, 1
        %s223 = smul.addr %s222, 8
        %s224 = scalar_lea.vmem [#allocation2], %s223
        // Predicated region
        $region37: #{tpu_custom_call.1} parent=35 // pred_check
          %p225 = pneg %p45
        $region38: #{tpu_custom_call.1} parent=35 // pred_check_branch
          %227 = sbr.rel (%p225) target = $region40
        $region39: #{tpu_custom_call.1} parent=35 // pred_region
          %229 = dma.done %s221, 128
        $region40: #{tpu_custom_call.1} parent=35 // pred_fallthru
          _
        %s230 = sand.u32 %s24, 1
        %s231 = scalar_lea.sflag [#allocation6], %s230
        %s232 = sand.u32 %s58, 1
        %s233 = smul.addr %s232, 8
        %s234 = scalar_lea.vmem [#allocation5], %s233
        // Predicated region
        $region41: #{tpu_custom_call.1} parent=35 // pred_check
          %p235 = pneg %p71
        $region42: #{tpu_custom_call.1} parent=35 // pred_check_branch
          %237 = sbr.rel (%p235) target = $region44
        $region43: #{tpu_custom_call.1} parent=35 // pred_region
          %239 = dma.done %s231, 128
        $region44: #{tpu_custom_call.1} parent=35 // pred_fallthru
          _
        // Predicated region
        $region45: #{tpu_custom_call.1} parent=35 // pred_check
          %p240 = pneg %p92
        $region46: #{tpu_custom_call.1} parent=35 // pred_check_branch
          %242 = sbr.rel (%p240) target = $region48
        $region47: #{tpu_custom_call.1} parent=35 // pred_region
          %244 = dma.done [#allocation6], 4096
        $region48: #{tpu_custom_call.1} parent=35 // pred_fallthru
          _
        %s245 = sand.u32 %s32, 1
        %s246 = scalar_lea.sflag [#allocation3], %s245
        %s247 = sand.u32 %s32, 1
        %s248 = smul.addr %s247, 8
        %s249 = scalar_lea.vmem [#allocation2], %s248
        %p250 = pneg %p45
        %p251 = pneg %p42
        %s252 = sand.u32 %s24, 1
        %s253 = scalar_lea.sflag [#allocation6], %s252
        %s254 = sand.u32 %s58, 1
        %s255 = smul.addr %s254, 8
        %s256 = scalar_lea.vmem [#allocation5], %s255
        %p257 = pneg %p71
        %p258 = pneg %p68
        %p259 = pneg %p92
        %p260 = pneg %p89
        %p261 = pneg %p113
        %p262 = pneg %p110
        %p263 = pneg %p139
        %p264 = pneg %p136
        %s265 = sand.u32 %s126, 1
        %s266 = scalar_lea.sflag [#allocation4], %s265
        %s267 = sand.u32 %s126, 1
        %s268 = smul.addr %s267, 8
        %s269 = scalar_lea.vmem [#allocation8], %s268
        %v270 = vld [vmem:[%s224] sm:$0xff]
        %v271 = vld [vmem:[%s234] sm:$0xff]
        %v272 = vld [vmem:[#allocation7] sm:$0xff]
        %v273 = vld [vmem:[#allocation7 + $0x8] sm:$0xff]
        %v274 = vld [vmem:[#allocation7 + $0x10] sm:$0xff]
        %v275 = vld [vmem:[#allocation7 + $0x18] sm:$0xff]
        %v276 = vld [vmem:[#allocation7 + $0x20] sm:$0xff]
        %v277 = vld [vmem:[#allocation7 + $0x28] sm:$0xff]
        %v278 = vld [vmem:[#allocation7 + $0x30] sm:$0xff]
        %v279 = vld [vmem:[#allocation7 + $0x38] sm:$0xff]
        %v280 = vld [vmem:[#allocation7 + $0x40] sm:$0xff]
        %v281 = vld [vmem:[#allocation7 + $0x48] sm:$0xff]
        %v282 = vld [vmem:[#allocation7 + $0x50] sm:$0xff]
        %v283 = vld [vmem:[#allocation7 + $0x58] sm:$0xff]
        %v284 = vld [vmem:[#allocation7 + $0x60] sm:$0xff]
        %v285 = vld [vmem:[#allocation7 + $0x68] sm:$0xff]
        %v286 = vld [vmem:[#allocation7 + $0x70] sm:$0xff]
        %v287 = vld [vmem:[#allocation7 + $0x78] sm:$0xff]
        %v288 = vld [vmem:[#allocation7 + $0x80] sm:$0xff]
        %v289 = vld [vmem:[#allocation7 + $0x88] sm:$0xff]
        %v290 = vld [vmem:[#allocation7 + $0x90] sm:$0xff]
        %v291 = vld [vmem:[#allocation7 + $0x98] sm:$0xff]
        %v292 = vld [vmem:[#allocation7 + $0xa0] sm:$0xff]
        %v293 = vld [vmem:[#allocation7 + $0xa8] sm:$0xff]
        %v294 = vld [vmem:[#allocation7 + $0xb0] sm:$0xff]
        %v295 = vld [vmem:[#allocation7 + $0xb8] sm:$0xff]
        %v296 = vld [vmem:[#allocation7 + $0xc0] sm:$0xff]
        %v297 = vld [vmem:[#allocation7 + $0xc8] sm:$0xff]
        %v298 = vld [vmem:[#allocation7 + $0xd0] sm:$0xff]
        %v299 = vld [vmem:[#allocation7 + $0xd8] sm:$0xff]
        %v300 = vld [vmem:[#allocation7 + $0xe0] sm:$0xff]
        %v301 = vld [vmem:[#allocation7 + $0xe8] sm:$0xff]
        %v302 = vld [vmem:[#allocation7 + $0xf0] sm:$0xff]
        %v303 = vld [vmem:[#allocation7 + $0xf8] sm:$0xff]
        %v304 = vld [vmem:[%s3] sm:$0x1]
        %v306 = vperm.slane %v304, 0
        %308 = vmatpush.msra.mxu0 %v287
        %309 = vmatpush.msra.mxu0 %v286
        %310 = vmatpush.msra.mxu0 %v285
        %311 = vmatpush.msra.mxu0 %v284
        %312 = vmatpush.msra.mxu0 %v283
        %313 = vmatpush.msra.mxu0 %v282
        %314 = vmatpush.msra.mxu0 %v281
        %315 = vmatpush.msra.mxu0 %v280
        %316 = vmatpush.msra.mxu0 %v279
        %317 = vmatpush.msra.mxu0 %v278
        %318 = vmatpush.msra.mxu0 %v277
        %319 = vmatpush.msra.mxu0 %v276
        %320 = vmatpush.msra.mxu0 %v275
        %321 = vmatpush.msra.mxu0 %v274
        %322 = vmatpush.msra.mxu0 %v273
        %323 = vmatpush.msra.mxu0 %v272
        %324 = vmatmul.f32.gmra.mxu0 %v270
        %v325 = vpop.f32.mrf.mxu0
        %v326 = vadd.f32 %v306, %v325
        %327 = vdwg.mxu0
        %328 = vmatpush.msra.mxu0 %v303
        %329 = vmatpush.msra.mxu0 %v302
        %330 = vmatpush.msra.mxu0 %v301
        %331 = vmatpush.msra.mxu0 %v300
        %332 = vmatpush.msra.mxu0 %v299
        %333 = vmatpush.msra.mxu0 %v298
        %334 = vmatpush.msra.mxu0 %v297
        %335 = vmatpush.msra.mxu0 %v296
        %336 = vmatpush.msra.mxu0 %v295
        %337 = vmatpush.msra.mxu0 %v294
        %338 = vmatpush.msra.mxu0 %v293
        %339 = vmatpush.msra.mxu0 %v292
        %340 = vmatpush.msra.mxu0 %v291
        %341 = vmatpush.msra.mxu0 %v290
        %342 = vmatpush.msra.mxu0 %v289
        %343 = vmatpush.msra.mxu0 %v288
        %344 = vmatmul.f32.gmra.mxu0 %v271
        %v345 = vpop.f32.mrf.mxu0
        %v346 = vadd.f32 %v326, %v345
        %347 = vdwg.mxu0
        %v348 = vtanh.pop %v346
        %349 = vst [vmem:[%s269] sm:$0xff] %v348
        %s350 = sand.u32 %s126, 1
        %s351 = scalar_lea.sflag [#allocation4], %s350
        %s352 = sand.u32 %s126, 1
        %s353 = smul.addr %s352, 8
        %s354 = scalar_lea.vmem [#allocation8], %s353
        // Predicated region
        $region49: #{tpu_custom_call.1} parent=35 // pred_check
          %p355 = pneg %p136
        $region50: #{tpu_custom_call.1} parent=35 // pred_check_branch
          %357 = sbr.rel (%p355) target = $region52
        $region51: #{tpu_custom_call.1} parent=35 // pred_region
          %359 = vsyncadd %s351, 0
          %s360 = smul.addr %s24, 8
          %s361 = scalar_lea.hbm %s4, %s360
          %s363 = sshll.u32 %s354, 4
          %s364 = int_to_ptr.vmem [resolvable:$true] %s363
          %s365 = sshll.u32 %s361, 4
          %s366 = int_to_ptr.hbm [resolvable:$true] %s365
          %368 = dma.vmem_to_hbm [thread:$0]  %s364, 128, %s366, %s351
        $region52: #{tpu_custom_call.1} parent=35 // pred_fallthru
          _
      $region36: #{tpu_custom_call.1} parent=5 // pred_fallthru
        _
      %p369 = scmp.le.s32.totalorder 2, %s19
      // Predicated region
      $region53: #{tpu_custom_call.1} parent=5 // pred_check
        %p370 = pneg %p369
      $region54: #{tpu_custom_call.1} parent=5 // pred_check_branch
        %372 = sbr.rel (%p370) target = $region56
      $region55: #{tpu_custom_call.1} parent=5 // pred_region
        %s373 = ssub.s32 %s19, 2
        // Predicated region
        $region57: #{tpu_custom_call.1} parent=55 // pred_check
          %p374 = pneg %p142
        $region58: #{tpu_custom_call.1} parent=55 // pred_check_branch
          %376 = sbr.rel (%p374) target = $region60
        $region59: #{tpu_custom_call.1} parent=55 // pred_region
          %s377 = sand.u32 %s127, 1
          %s378 = scalar_lea.sflag [#allocation4], %s377
          %s379 = sand.u32 %s127, 1
          %s380 = smul.addr %s379, 8
          %s381 = scalar_lea.vmem [#allocation8], %s380
          %383 = dma.done %s378, 128
        $region60: #{tpu_custom_call.1} parent=55 // pred_fallthru
          _
      $region56: #{tpu_custom_call.1} parent=5 // pred_fallthru
        _
    $region6: #{tpu_custom_call.1} parent=1 // loop_footer
      %s23 = sadd.s32 1, %s19
    $region7: #{tpu_custom_call.1} parent=1 // loop_footer_branch
      %18 = sbr.rel target = $region3
    $region8: #{tpu_custom_call.1} parent=1 // loop_exit
      _
    %384 = vsyncpa [#allocation3], 1
    %s385 = scalar_lea.sflag [#allocation3], 1
    %386 = vsyncpa %s385, 1
    %387 = vsyncpa [#allocation6], 1
    %s388 = scalar_lea.sflag [#allocation6], 1
    %389 = vsyncpa %s388, 1
    %390 = vsyncpa [#allocation4], 1
    %s391 = scalar_lea.sflag [#allocation4], 1
    %392 = vsyncpa %s391, 1

</llo_original>
